<compile_context>
chip_gen: v7x
topology: tpu7x:2x2x1
jax: 0.10.0
libtpu: 0.0.40
codegen_flags: <defaults>
</compile_context>

<pallas_src>
import jax
import jax.numpy as jnp
from jax import lax
from jax.experimental import pallas as pl
from jax.experimental.pallas import tpu as pltpu


def _round_up(n: int, m: int) -> int:
    return ((n + m - 1) // m) * m


# Double-buffered x working-set budget. Sized for the smallest-VMEM generation
# (v7x: 64 MiB physical / 32 MiB scoped default); v5e/v6e have 128 MiB so this is
# comfortably conservative there too.
_X_VMEM_BUDGET = 24 * 1024 * 1024
_MAX_TILE_ROWS = 8192
_MIN_TILE_ROWS = 128


def _choose_tile_rows(n_rows: int, h: int, itemsize: int) -> int:
    """Pick the row-tile size for the flattened (B*L, H) input."""
    h_lanes = _round_up(h, 128)                       # VMEM lane-padded width
    per_row_bytes = max(1, h_lanes * itemsize)
    budget_rows = max(8, _X_VMEM_BUDGET // (2 * per_row_bytes))  # 2 = double buffering

    if n_rows <= min(_MIN_TILE_ROWS, budget_rows):
        # Single full-extent block (block_shape == array dims -> always legal).
        return n_rows

    tile = min(_MAX_TILE_ROWS, budget_rows)
    # Keep at least 2 tiles so the "parallel" grid axis actually shards across both
    # v7x TensorCores (no effect on single-TC v5e/v6e).
    tile = min(tile, _round_up(pl.cdiv(n_rows, 2), _MIN_TILE_ROWS))
    tile = max(_MIN_TILE_ROWS, (tile // _MIN_TILE_ROWS) * _MIN_TILE_ROWS)
    return tile


def _vector_probe_kernel(x_ref, w_ref, rproj_ref, o_ref):
    # x_ref:     (TILE, H)       row tile of the flattened (B*L, H) input (native dtype)
    # w_ref:     (h_inner, H)    projection weight, original orientation
    # rproj_ref: (h_inner, 1)    (X @ r), precomputed in the wrapper
    # o_ref:     (1, 1, TILE)    per-row L2 norms, lane-dense
    xv = x_ref[...].astype(jnp.float32)               # upcast after the DMA (free-ish VPU)
    # NT matmul: contract both operands on their H (lane) axis -> (h_inner, TILE).
    proj = lax.dot_general(w_ref[...], xv, (((1,), (1,)), ((), ())),
                           preferred_element_type=jnp.float32)
    proj = proj - rproj_ref[...]                      # == X @ (x - r)^T, (h_inner,1) broadcast
    sq = jnp.sum(proj * proj, axis=0, keepdims=True)  # sublane reduce -> (1, TILE)
    o_ref[0] = jnp.sqrt(sq)                           # full-lane store


def vector_probe_forward(x, r, x_weight, *, force_pallas=None):
    """x: (B, L, H); r: (H,); x_weight: (h_inner, H) (nn.Linear weight)."""
    B, L, H = x.shape
    h_inner = x_weight.shape[0]
    bl = B * L

    # r-norm safeguard from forward(): rescale r if its L2 norm exceeds 1000.
    # (Functional equivalent of the in-place parameter rescale.)
    r = r.astype(jnp.float32)
    r_norm = jnp.sqrt(jnp.sum(r * r))
    r = jnp.where(r_norm > 1000.0, r / (r_norm / 1000.0), r)

    w = x_weight.astype(jnp.float32)                  # (h_inner, H), original orientation
    # Algebraic refactor: X @ (x - r)^T == X @ x^T - X @ r.
    r_proj = (w @ r).reshape(h_inner, 1)              # (h_inner, 1)

    use_pallas = force_pallas
    if use_pallas is None:
        use_pallas = bl * H * x.dtype.itemsize >= (1 << 20)

    if not use_pallas:
        # Small-problem fallback: XLA fuses this trivially; a pallas_call launch
        # would cost more than the entire op.
        delta = x.astype(jnp.float32) - r[None, None, :]
        proj = jnp.einsum("blh,ih->bli", delta, w)
        d = jnp.sqrt(jnp.sum(proj * proj, axis=-1))
        return d / (jnp.sqrt(jnp.sum(d * d)) + 1e-10)

    # --- Pallas path -------------------------------------------------------
    x2d = x.reshape(bl, H)                            # free reshape, native dtype, no copy
    tile = _choose_tile_rows(bl, H, x2d.dtype.itemsize)
    num_tiles = pl.cdiv(bl, tile)

    # VMEM limit from the actual double-buffered working set (x + lane-dense out),
    # clipped to a v7x-safe ceiling.
    h_lanes = _round_up(H, 128)
    x_bytes = 2 * tile * h_lanes * int(x2d.dtype.itemsize)
    out_bytes = 2 * 8 * _round_up(tile, 128) * 4
    vmem_limit = int(min(48 << 20, max(16 << 20, x_bytes + out_bytes + (8 << 20))))

    row_norms = pl.pallas_call(
        _vector_probe_kernel,
        out_shape=jax.ShapeDtypeStruct((num_tiles, 1, tile), jnp.float32),
        grid=(num_tiles,),
        in_specs=[
            # If a profile still shows gaps between x DMAs, add
            # pipeline_mode=pl.Buffered(3) here (unnecessary at these tile sizes).
            pl.BlockSpec((tile, H), lambda i: (i, 0)),
            pl.BlockSpec((h_inner, H), lambda i: (0, 0)),
            pl.BlockSpec((h_inner, 1), lambda i: (0, 0)),
        ],
        out_specs=pl.BlockSpec((1, 1, tile), lambda i: (i, 0, 0)),
        compiler_params=pltpu.CompilerParams(
            dimension_semantics=("parallel",),
            vmem_limit_bytes=vmem_limit,
        ),
    )(x2d, w, r_proj)

    # Rows beyond bl in the last (partial) tile contain garbage; slice them off
    # before the global normalization (hoisted out of the kernel: tiny (B*L,) vector).
    d = row_norms.reshape(num_tiles * tile)[:bl]
    out = d / (jnp.sqrt(jnp.sum(d * d)) + 1e-10)
    return out.reshape(B, L)


def _reference_forward(x, r, x_weight):
    # Pure-JAX reference mirroring the PyTorch forward (l2 path).
    r = r.astype(jnp.float32)
    r_norm = jnp.linalg.norm(r)
    r = jnp.where(r_norm > 1000.0, r / (r_norm / 1000.0), r)
    delta = x.astype(jnp.float32) - r[None, None, :]
    delta = jnp.einsum("blh,ih->bli", delta, x_weight.astype(jnp.float32))
    d = jnp.linalg.norm(delta, axis=-1)
    return d / (jnp.linalg.norm(d) + 1e-10)


if __name__ == "__main__":
    # Note: self.lin (nn.Linear(h_outer, 1)) is unused in forward(), so it is not
    # materialized here.
    key = jax.random.PRNGKey(0)

    # ---- Test 1: small shape consistent with the module (batch=2, seq=8,
    # outer_hidden_dim=32, inner_hidden_dim=2); force the Pallas kernel path.
    B, L, H, H_INNER = 2, 8, 32, 2
    k1, k2, k3, key = jax.random.split(key, 4)
    x = jax.random.normal(k1, (B, L, H), dtype=jnp.float32)
    r = jax.random.normal(k2, (H,), dtype=jnp.float32)          # nn.init.normal_
    bound = 1.0 / (H ** 0.5)
    x_weight = jax.random.uniform(k3, (H_INNER, H), dtype=jnp.float32,
                                  minval=-bound, maxval=bound)

    out = jax.block_until_ready(vector_probe_forward(x, r, x_weight, force_pallas=True))
    ref = _reference_forward(x, r, x_weight)
    assert out.shape == (B, L)
    assert jnp.allclose(out, ref, atol=1e-5, rtol=1e-4), (out, ref)

    # ---- Test 2: larger shape that exercises the auto Pallas path with a ragged
    # last row-tile (B*L not a multiple of the tile size) and num_tiles >= 2.
    B2, L2, H2 = 2, 1400, 96
    k1, k2, k3, key = jax.random.split(key, 4)
    x2 = jax.random.normal(k1, (B2, L2, H2), dtype=jnp.float32)
    r2 = jax.random.normal(k2, (H2,), dtype=jnp.float32)
    bound2 = 1.0 / (H2 ** 0.5)
    w2 = jax.random.uniform(k3, (H_INNER, H2), dtype=jnp.float32,
                            minval=-bound2, maxval=bound2)

    out2 = jax.block_until_ready(vector_probe_forward(x2, r2, w2))
    ref2 = _reference_forward(x2, r2, w2)
    assert out2.shape == (B2, L2)
    assert jnp.allclose(out2, ref2, atol=1e-5, rtol=1e-4)

    # ---- Test 3: small-problem auto path (pure-JAX fallback) matches too.
    out3 = jax.block_until_ready(vector_probe_forward(x, r, x_weight))
    assert jnp.allclose(out3, ref, atol=1e-5, rtol=1e-4)

    print("KERNEL_OK")
</pallas_src>

<mosaic_0001>
module attributes {stable_mosaic.version = 11 : i64} {
  func.func @_vector_probe_kernel(%arg0: i32, %arg1: memref<16x32xf32, #tpu.memory_space<vmem>>, %arg2: memref<2x32xf32, #tpu.memory_space<vmem>>, %arg3: memref<2x1xf32, #tpu.memory_space<vmem>>, %arg4: memref<1x1x16xf32, #tpu.memory_space<vmem>>) attributes {dimension_semantics = [#tpu.dimension_semantics<parallel>], iteration_bounds = array<i64: 1>, scalar_prefetch = 0 : i64, scratch_operands = 0 : i64, tpu.core_type = #tpu.core_type<tc>, window_params = [{transform_indices = @transform_0, window_bounds = array<i64: 16, 32>}, {pipeline_mode = #tpu.pipeline_mode<synchronous>, transform_indices = @transform_1, window_bounds = array<i64: 2, 32>}, {pipeline_mode = #tpu.pipeline_mode<synchronous>, transform_indices = @transform_2, window_bounds = array<i64: 2, 1>}, {transform_indices = @transform_3, window_bounds = array<i64: 1, 1, 16>}]} {
    %c0 = arith.constant 0 : index
    %c0_0 = arith.constant 0 : index
    %0 = vector.load %arg1[%c0, %c0_0] : memref<16x32xf32, #tpu.memory_space<vmem>>, vector<16x32xf32>
    %c0_1 = arith.constant 0 : index
    %c0_2 = arith.constant 0 : index
    %1 = vector.load %arg2[%c0_1, %c0_2] : memref<2x32xf32, #tpu.memory_space<vmem>>, vector<2x32xf32>
    %cst = arith.constant dense<0.000000e+00> : vector<2x16xf32>
    %2 = tpu.matmul %1, %0, %cst {dimension_numbers = #tpu.dot_dimension_numbers<[1], [1], [0], [0], [0, 0, 1, 0], [], []>} : vector<2x32xf32>, vector<16x32xf32>, vector<2x16xf32> -> vector<2x16xf32>
    %c0_3 = arith.constant 0 : index
    %c0_4 = arith.constant 0 : index
    %3 = vector.load %arg3[%c0_3, %c0_4] : memref<2x1xf32, #tpu.memory_space<vmem>>, vector<2x1xf32>
    %4 = vector.broadcast %3 : vector<2x1xf32> to vector<2x16xf32>
    %5 = arith.subf %2, %4 : vector<2x16xf32>
    %6 = arith.mulf %5, %5 : vector<2x16xf32>
    %cst_5 = arith.constant dense<0.000000e+00> : vector<16xf32>
    %7 = vector.multi_reduction <add>, %6, %cst_5 [0] : vector<2x16xf32> to vector<16xf32>
    %8 = vector.shape_cast %7 : vector<16xf32> to vector<1x16xf32>
    %9 = math.sqrt %8 : vector<1x16xf32>
    %c0_6 = arith.constant 0 : index
    %c0_7 = arith.constant 0 : index
    %c0_8 = arith.constant 0 : index
    %10 = vector.load %arg4[%c0_6, %c0_7, %c0_8] : memref<1x1x16xf32, #tpu.memory_space<vmem>>, vector<1x1x16xf32>
    %11 = vector.shape_cast %10 : vector<1x1x16xf32> to vector<1x16xf32>
    %12 = vector.shape_cast %9 : vector<1x16xf32> to vector<1x1x16xf32>
    tpu.vector_store %arg4[%c0_6, %c0_7, %c0_8], %12 {strides = array<i32>} : memref<1x1x16xf32, #tpu.memory_space<vmem>>, vector<1x1x16xf32>,
    return
  }
  func.func @transform_0(%arg0: i32) -> (i32, i32) {
    %c0_i32 = arith.constant 0 : i32
    %c0_i32_0 = arith.constant 0 : i32
    return %arg0, %c0_i32 : i32, i32
  }
  func.func @transform_1(%arg0: i32) -> (i32, i32) {
    %c0_i32 = arith.constant 0 : i32
    %c0_i32_0 = arith.constant 0 : i32
    %c0_i32_1 = arith.constant 0 : i32
    return %c0_i32, %c0_i32_0 : i32, i32
  }
  func.func @transform_2(%arg0: i32) -> (i32, i32) {
    %c0_i32 = arith.constant 0 : i32
    %c0_i32_0 = arith.constant 0 : i32
    %c0_i32_1 = arith.constant 0 : i32
    return %c0_i32, %c0_i32_0 : i32, i32
  }
  func.func @transform_3(%arg0: i32) -> (i32, i32, i32) {
    %c0_i32 = arith.constant 0 : i32
    %c0_i32_0 = arith.constant 0 : i32
    %c0_i32_1 = arith.constant 0 : i32
    return %arg0, %c0_i32, %c0_i32_0 : i32, i32, i32
  }
}

</mosaic_0001>

<llo_original>
// kernel: tpu_custom_call.1
$region0: #{tpu_custom_call.1}
  #allocation0 [shape = 'u32[]', space=smem, size = 0x4, offset = 0x4, fixed_abs, tag = 'smem constant byte address 0x4 - core index']
  #allocation1 [shape = 'u32[144,128]{1,0:T(1,128)}', space=vmem, size = 0x12000, scoped, tag = 'internal scratch']
  %s0 = inlined_call_operand.hbm [shape: f32[16,32], index: 0, kind: input, shape index: {}]
  %s1 = inlined_call_operand.vmem [shape: f32[2,32], index: 1, kind: input, shape index: {}]
  %s2 = inlined_call_operand.vmem [shape: f32[2,1], index: 2, kind: input, shape index: {}]
  %s3 = inlined_call_operand.hbm [shape: f32[1,1,16], index: 3, kind: output, shape index: {}]
  %s4 = sld [smem:[#allocation0]]
  $region26: #{tpu_custom_call.1} parent=0
    _
  %s6 = ssub.s32 1, %s4
  %s7 = scalar_select 0, %s6, %s4
  $region1: #{tpu_custom_call.1} parent=0
    #allocation2 [shape = 'u8[8192]{0}', space=vmem, size = 0x2000, scoped, tag = 'input window, operand 0, single buffered']
    #allocation3 [shape = 's32[1]{0}', space=sflag, size = 0x4, scoped, tag = 'scoped memory for tpu_custom_call.1']
    #allocation4 [shape = 's32[1]{0}', space=sflag, size = 0x4, scoped, tag = 'scoped memory for tpu_custom_call.1']
    #allocation5 [shape = 'u8[512]{0}', space=vmem, size = 0x400, scoped, tag = 'output window, operand 0, single buffered']
    %8 = vsyncpa [#allocation3], 0
    %9 = vsyncpa [#allocation4], 0
    // Predicated region
    $region2: #{tpu_custom_call.1} parent=1 // pred_check
      _
    $region3: #{tpu_custom_call.1} parent=1 // pred_check_branch
      %11 = sbr.rel (0) target = $region5
    $region4: #{tpu_custom_call.1} parent=1 // pred_region
      %s13 = ssub.s32 256, 256
      %14 = vsyncadd [#allocation3], %s13
      %s15 = sshll.u32 [#allocation2], 4
      %s16 = int_to_ptr.vmem [resolvable:$true] %s15
      %21 = dma.hbm_to_vmem [thread:$0]  %s0, 256, %s16, [#allocation3], 128, 128, 8
    $region5: #{tpu_custom_call.1} parent=1 // pred_fallthru
      _
    // Predicated region
    $region6: #{tpu_custom_call.1} parent=1 // pred_check
      _
    $region7: #{tpu_custom_call.1} parent=1 // pred_check_branch
      %23 = sbr.rel (0) target = $region9
    $region8: #{tpu_custom_call.1} parent=1 // pred_region
      _
    $region9: #{tpu_custom_call.1} parent=1 // pred_fallthru
      _
    // Predicated region
    $region10: #{tpu_custom_call.1} parent=1 // pred_check
      _
    $region11: #{tpu_custom_call.1} parent=1 // pred_check_branch
      %25 = sbr.rel (0) target = $region13
    $region12: #{tpu_custom_call.1} parent=1 // pred_region
      _
    $region13: #{tpu_custom_call.1} parent=1 // pred_fallthru
      _
    // Predicated region
    $region14: #{tpu_custom_call.1} parent=1 // pred_check
      _
    $region15: #{tpu_custom_call.1} parent=1 // pred_check_branch
      %27 = sbr.rel (0) target = $region17
    $region16: #{tpu_custom_call.1} parent=1 // pred_region
      %28 = dma.done [#allocation3], 256
    $region17: #{tpu_custom_call.1} parent=1 // pred_fallthru
      _
    %v29 = vld [vmem:[#allocation2] sm:$0xff]
    %v30 = vld [vmem:[#allocation2 + $0x8] sm:$0xff]
    %v31 = vld [vmem:[%s1] sm:$0x3]
    %vm32 = vcmask 261120
    %v34 = vsel %vm32, %v31, 0
    %v37 = vsel %vm32, %v29, 0
    %v40 = vsel %vm32, %v30, 0
    %42 = vmatprep.subr.mxu0 0.0
    %43 = vmatpush1.xpose.msra.mxu0 %v37
    %44 = vmatprep.subr.mxu0 0.0
    %45 = vmatpush1.xpose.msra.mxu0 %v40
    %46 = vmatprep.subr.mxu0 0.0
    %47 = vmatpush1.xpose.msra.mxu0 0.0
    %48 = vmatprep.subr.mxu0 0.0
    %49 = vmatpush1.xpose.msra.mxu0 0.0
    %50 = vmatprep.subr.mxu0 0.0
    %51 = vmatpush1.xpose.msra.mxu0 0.0
    %52 = vmatprep.subr.mxu0 0.0
    %53 = vmatpush1.xpose.msra.mxu0 0.0
    %54 = vmatprep.subr.mxu0 0.0
    %55 = vmatpush1.xpose.msra.mxu0 0.0
    %56 = vmatprep.subr.mxu0 0.0
    %57 = vmatpush1.xpose.msra.mxu0 0.0
    %58 = vmatprep.subr.mxu0 0.0
    %59 = vmatpush1.xpose.msra.mxu0 0.0
    %60 = vmatprep.subr.mxu0 0.0
    %61 = vmatpush1.xpose.msra.mxu0 0.0
    %62 = vmatprep.subr.mxu0 0.0
    %63 = vmatpush1.xpose.msra.mxu0 0.0
    %64 = vmatprep.subr.mxu0 0.0
    %65 = vmatpush1.xpose.msra.mxu0 0.0
    %66 = vmatprep.subr.mxu0 0.0
    %67 = vmatpush1.xpose.msra.mxu0 0.0
    %68 = vmatprep.subr.mxu0 0.0
    %69 = vmatpush1.xpose.msra.mxu0 0.0
    %70 = vmatprep.subr.mxu0 0.0
    %71 = vmatpush1.xpose.msra.mxu0 0.0
    %72 = vmatprep.subr.mxu0 0.0
    %73 = vmatpush1.xpose.msra.mxu0 0.0
    %74 = vmatprep.subr.mxu0 0.0
    %75 = vmatpush1.xpose.msra.mxu0 0.0
    %76 = vmatprep.subr.mxu0 0.0
    %77 = vmatpush1.xpose.msra.mxu0 0.0
    %78 = vmatprep.subr.mxu0 0.0
    %79 = vmatpush1.xpose.msra.mxu0 0.0
    %80 = vmatprep.subr.mxu0 0.0
    %81 = vmatpush1.xpose.msra.mxu0 0.0
    %82 = vmatprep.subr.mxu0 0.0
    %83 = vmatpush1.xpose.msra.mxu0 0.0
    %84 = vmatprep.subr.mxu0 0.0
    %85 = vmatpush1.xpose.msra.mxu0 0.0
    %86 = vmatprep.subr.mxu0 0.0
    %87 = vmatpush1.xpose.msra.mxu0 0.0
    %88 = vmatprep.subr.mxu0 0.0
    %89 = vmatpush1.xpose.msra.mxu0 0.0
    %90 = vmatprep.subr.mxu0 0.0
    %91 = vmatpush1.xpose.msra.mxu0 0.0
    %92 = vmatprep.subr.mxu0 0.0
    %93 = vmatpush1.xpose.msra.mxu0 0.0
    %94 = vmatprep.subr.mxu0 0.0
    %95 = vmatpush1.xpose.msra.mxu0 0.0
    %96 = vmatprep.subr.mxu0 0.0
    %97 = vmatpush1.xpose.msra.mxu0 0.0
    %98 = vmatprep.subr.mxu0 0.0
    %99 = vmatpush1.xpose.msra.mxu0 0.0
    %100 = vmatprep.subr.mxu0 0.0
    %101 = vmatpush1.xpose.msra.mxu0 0.0
    %102 = vmatprep.subr.mxu0 0.0
    %103 = vmatpush1.xpose.msra.mxu0 0.0
    %104 = vmatprep.subr.mxu0 0.0
    %105 = vmatpush1.xpose.msra.mxu0 0.0
    %106 = vmatprep.mubr.f32.mxu0 0.0
    %107 = vmatmul.mubr.f32.gmra.mrb[0].mxu0 %v34
    %v108 = vpop.f32.mrb[0].mxu0
    %v109 = vadd.f32 0.0, %v108
    %v110 = vpop.f32.mrb[0].mxu0
    %111 = vdwg.mxu0
    %v112 = vld [vmem:[%s2] sm:$0x3]
    %114 = vset.pattern.permute.xlu0 0
    %115 = vperm.xlu0 %114, %v112
    %v116 = vpop.permute.xlu0 %115
    %v118 = vsub.f32 %v109, %v116
    %v119 = vmul.f32 %v118, %v118
    %vm120 = vcmask 123904
    %v121 = vsel %vm120, %v119, 0.0
    %v122 = vrot.slane %v121, 4
    %v123 = vadd.f32 %v121, %v122
    %v124 = vrot.slane %v123, 2
    %v125 = vadd.f32 %v123, %v124
    %v126 = vrot.slane %v125, 1
    %v127 = vadd.f32 %v125, %v126
    %v128 = vrsqrt.pop %v127
    %v129 = vmul.f32 %v127, %v128
    %vm130 = vcmp.eq.f32.partialorder %v127, inf
    %v131 = vsel %vm130, %v127, %v129
    %vm132 = vcmp.eq.f32.partialorder %v127, 0.0
    %v133 = vand.u32 %v127, 2147483648
    %v134 = vsel %vm132, %v133, %v131
    %vm135 = vcmask 122880
    %136 = vst.msk [vmem:[#allocation5] sm:$0x1] %vm135, %v134
    // Predicated region
    $region18: #{tpu_custom_call.1} parent=1 // pred_check
      _
    $region19: #{tpu_custom_call.1} parent=1 // pred_check_branch
      %138 = sbr.rel (0) target = $region21
    $region20: #{tpu_custom_call.1} parent=1 // pred_region
      %s140 = ssub.s32 16, 16
      %141 = vsyncadd [#allocation4], %s140
      %s143 = sshll.u32 [#allocation5], 4
      %s144 = int_to_ptr.vmem [resolvable:$true] %s143
      %146 = dma.vmem_to_hbm [thread:$0]  %s144, 16, %s3, [#allocation4]
    $region21: #{tpu_custom_call.1} parent=1 // pred_fallthru
      _
    // Predicated region
    $region22: #{tpu_custom_call.1} parent=1 // pred_check
      _
    $region23: #{tpu_custom_call.1} parent=1 // pred_check_branch
      %148 = sbr.rel (0) target = $region25
    $region24: #{tpu_custom_call.1} parent=1 // pred_region
      %149 = dma.done [#allocation4], 16
    $region25: #{tpu_custom_call.1} parent=1 // pred_fallthru
      _
    %150 = vsyncpa [#allocation3], 1
    %151 = vsyncpa [#allocation4], 1

</llo_original>
